<compile_context>
chip_gen: v5e
topology: v5e:2x2
jax: 0.10.0
libtpu: 0.0.40
codegen_flags: <defaults>
</compile_context>

<pallas_src>
import jax
import jax.numpy as jnp
from jax.experimental import pallas as pl
from jax.experimental.pallas import tpu as pltpu


def drloc_mlp_kernel(x_ref, w1_ref, b1_ref, w2_ref, b2_ref, w3_ref, b3_ref,
                     out_ref):
    # Layer 1: Linear (bf16 operands into MXU, f32 accumulate) + bias + ReLU.
    x = x_ref[...].astype(jnp.bfloat16)
    h = jnp.dot(x, w1_ref[...], preferred_element_type=jnp.float32)
    h = jnp.maximum(h + b1_ref[...], 0.0)
    # Layer 2: Linear + bias + ReLU.
    h = jnp.dot(h.astype(jnp.bfloat16), w2_ref[...],
                preferred_element_type=jnp.float32)
    h = jnp.maximum(h + b2_ref[...], 0.0)
    # Layer 3: Linear + bias (no activation).
    y = jnp.dot(h.astype(jnp.bfloat16), w3_ref[...],
                preferred_element_type=jnp.float32)
    y = y + b3_ref[...]
    out_ref[...] = y.astype(out_ref.dtype)


def _choose_tile_b(batch, input_dim, hidden_dim, output_dim):
    """Pick a large batch tile that fits the VMEM budget and yields >=2 steps."""
    budget = 24 * 1024 * 1024  # stay under the default 32 MiB scoped limit
    # Weights (bf16) may be double-buffered by the pipeline; count 2x to be safe.
    weight_bytes = 2 * 2 * (input_dim * hidden_dim
                            + hidden_dim * hidden_dim
                            + hidden_dim * output_dim)
    # Per batch row: x tile (f32, 2 buffers) + out tile (f32, 2 buffers)
    # + f32 intermediates (~2 live hidden-width temporaries).
    per_row = 2 * 4 * input_dim + 2 * 4 * output_dim + 2 * 4 * hidden_dim
    avail = max(budget - weight_bytes, 64 * per_row)
    max_rows = max(8, avail // per_row)

    half = pl.cdiv(batch, 2)               # keep >= 2 grid steps (megacore)
    tile = min(1024, half, max_rows)
    tile = max(8, (tile // 8) * 8)          # f32 sublane multiple
    return int(tile)


def drloc_mlp(x, params, *, tile_b=None):
    """x: [B, input_dim] float32. params: dict of PyTorch-layout weights."""
    B, input_dim = x.shape

    # PyTorch Linear layout (out, in) -> (in, out); cast weights to bf16 for MXU.
    w1 = params["w1"].T.astype(jnp.bfloat16)
    w2 = params["w2"].T.astype(jnp.bfloat16)
    w3 = params["w3"].T.astype(jnp.bfloat16)
    b1 = params["b1"][None, :].astype(jnp.float32)
    b2 = params["b2"][None, :].astype(jnp.float32)
    b3 = params["b3"][None, :].astype(jnp.float32)
    hidden_dim = w1.shape[1]
    output_dim = w3.shape[1]

    if tile_b is None:
        tile_b = _choose_tile_b(B, input_dim, hidden_dim, output_dim)
    assert tile_b % 8 == 0, "tile_b must be a multiple of 8 (f32 sublane)"

    num_tiles = pl.cdiv(B, tile_b)
    B_pad = num_tiles * tile_b
    x_in = x if B_pad == B else jnp.pad(x, ((0, B_pad - B), (0, 0)))

    batch_map = lambda i: (i, 0)
    const_map = lambda i: (0, 0)

    out = pl.pallas_call(
        drloc_mlp_kernel,
        out_shape=jax.ShapeDtypeStruct((B_pad, output_dim), x.dtype),
        grid_spec=pl.GridSpec(
            grid=(num_tiles,),
            in_specs=[
                pl.BlockSpec((tile_b, input_dim), batch_map),        # x
                pl.BlockSpec((input_dim, hidden_dim), const_map),    # w1 (bf16)
                pl.BlockSpec((1, hidden_dim), const_map),            # b1 (f32)
                pl.BlockSpec((hidden_dim, hidden_dim), const_map),   # w2 (bf16)
                pl.BlockSpec((1, hidden_dim), const_map),            # b2 (f32)
                pl.BlockSpec((hidden_dim, output_dim), const_map),   # w3 (bf16)
                pl.BlockSpec((1, output_dim), const_map),            # b3 (f32)
            ],
            out_specs=pl.BlockSpec((tile_b, output_dim), batch_map),
        ),
        compiler_params=pltpu.CompilerParams(
            dimension_semantics=("parallel",)),
    )(x_in, w1, b1, w2, b2, w3, b3)

    return out[:B] if B_pad != B else out


def init_params(key, input_dim, hidden_dim, output_dim):
    """Deterministic synthetic init, PyTorch nn.Linear shapes: W[out,in], b[out]."""
    ks = jax.random.split(key, 6)
    scale = 0.1
    return {
        "w1": scale * jax.random.normal(ks[0], (hidden_dim, input_dim), jnp.float32),
        "b1": scale * jax.random.normal(ks[1], (hidden_dim,), jnp.float32),
        "w2": scale * jax.random.normal(ks[2], (hidden_dim, hidden_dim), jnp.float32),
        "b2": scale * jax.random.normal(ks[3], (hidden_dim,), jnp.float32),
        "w3": scale * jax.random.normal(ks[4], (output_dim, hidden_dim), jnp.float32),
        "b3": scale * jax.random.normal(ks[5], (output_dim,), jnp.float32),
    }


def reference_f32(x, p):
    h = jnp.maximum(x @ p["w1"].T + p["b1"], 0.0)
    h = jnp.maximum(h @ p["w2"].T + p["b2"], 0.0)
    return h @ p["w3"].T + p["b3"]


def reference_bf16(x, p):
    """Matches the kernel's precision recipe (bf16 matmul operands, f32 acc)."""
    bf = jnp.bfloat16
    h = jnp.dot(x.astype(bf), p["w1"].T.astype(bf),
                preferred_element_type=jnp.float32) + p["b1"]
    h = jnp.maximum(h, 0.0)
    h = jnp.dot(h.astype(bf), p["w2"].T.astype(bf),
                preferred_element_type=jnp.float32) + p["b2"]
    h = jnp.maximum(h, 0.0)
    return jnp.dot(h.astype(bf), p["w3"].T.astype(bf),
                   preferred_element_type=jnp.float32) + p["b3"]


if __name__ == "__main__":
    key = jax.random.PRNGKey(0)
    kx, kp = jax.random.split(key)

    B, input_dim, hidden_dim, output_dim = 16, 32, 64, 2
    x = jax.random.normal(kx, (B, input_dim), jnp.float32)
    params = init_params(kp, input_dim, hidden_dim, output_dim)

    out = drloc_mlp(x, params)
    out = jax.block_until_ready(out)
    assert out.shape == (B, output_dim)

    # Tight check against a precision-matched (bf16-operand) reference.
    ref_bf16 = reference_bf16(x, params)
    assert jnp.allclose(out, ref_bf16, atol=1e-4, rtol=1e-4), \
        "mismatch vs bf16-matched reference"

    # Looser sanity check against the full-f32 PyTorch-equivalent reference.
    ref_f32 = reference_f32(x, params)
    assert jnp.allclose(out, ref_f32, atol=5e-2, rtol=5e-2), \
        "mismatch vs f32 reference"

    print("KERNEL_OK")
</pallas_src>

<mosaic_0001>
module attributes {stable_mosaic.version = 11 : i64} {
  func.func @drloc_mlp_kernel(%arg0: i32, %arg1: memref<8x32xf32, #tpu.memory_space<vmem>>, %arg2: memref<32x64xbf16, #tpu.memory_space<vmem>>, %arg3: memref<1x64xf32, #tpu.memory_space<vmem>>, %arg4: memref<64x64xbf16, #tpu.memory_space<vmem>>, %arg5: memref<1x64xf32, #tpu.memory_space<vmem>>, %arg6: memref<64x2xbf16, #tpu.memory_space<vmem>>, %arg7: memref<1x2xf32, #tpu.memory_space<vmem>>, %arg8: memref<8x2xf32, #tpu.memory_space<vmem>>) attributes {dimension_semantics = [#tpu.dimension_semantics<parallel>], iteration_bounds = array<i64: 2>, scalar_prefetch = 0 : i64, scratch_operands = 0 : i64, tpu.core_type = #tpu.core_type<tc>, window_params = [{transform_indices = @transform_0, window_bounds = array<i64: 8, 32>}, {pipeline_mode = #tpu.pipeline_mode<synchronous>, transform_indices = @transform_1, window_bounds = array<i64: 32, 64>}, {pipeline_mode = #tpu.pipeline_mode<synchronous>, transform_indices = @transform_2, window_bounds = array<i64: 1, 64>}, {pipeline_mode = #tpu.pipeline_mode<synchronous>, transform_indices = @transform_3, window_bounds = array<i64: 64, 64>}, {pipeline_mode = #tpu.pipeline_mode<synchronous>, transform_indices = @transform_4, window_bounds = array<i64: 1, 64>}, {pipeline_mode = #tpu.pipeline_mode<synchronous>, transform_indices = @transform_5, window_bounds = array<i64: 64, 2>}, {pipeline_mode = #tpu.pipeline_mode<synchronous>, transform_indices = @transform_6, window_bounds = array<i64: 1, 2>}, {transform_indices = @transform_7, window_bounds = array<i64: 8, 2>}]} {
    %c0 = arith.constant 0 : index
    %c0_0 = arith.constant 0 : index
    %0 = vector.load %arg1[%c0, %c0_0] : memref<8x32xf32, #tpu.memory_space<vmem>>, vector<8x32xf32>
    %1 = arith.truncf %0 : vector<8x32xf32> to vector<8x32xbf16>
    %c0_1 = arith.constant 0 : index
    %c0_2 = arith.constant 0 : index
    %2 = vector.load %arg2[%c0_1, %c0_2] : memref<32x64xbf16, #tpu.memory_space<vmem>>, vector<32x64xbf16>
    %cst = arith.constant dense<0.000000e+00> : vector<8x64xf32>
    %3 = tpu.matmul %1, %2, %cst {dimension_numbers = #tpu.dot_dimension_numbers<[1], [0], [0], [1], [0, 0, 1, 1], [], []>} : vector<8x32xbf16>, vector<32x64xbf16>, vector<8x64xf32> -> vector<8x64xf32>
    %c0_3 = arith.constant 0 : index
    %c0_4 = arith.constant 0 : index
    %4 = vector.load %arg3[%c0_3, %c0_4] : memref<1x64xf32, #tpu.memory_space<vmem>>, vector<1x64xf32>
    %5 = vector.broadcast %4 : vector<1x64xf32> to vector<8x64xf32>
    %6 = arith.addf %3, %5 : vector<8x64xf32>
    %cst_5 = arith.constant 0.000000e+00 : f32
    %7 = vector.broadcast %cst_5 : f32 to vector<8x64xf32>
    %8 = arith.maximumf %6, %7 : vector<8x64xf32>
    %9 = arith.truncf %8 : vector<8x64xf32> to vector<8x64xbf16>
    %c0_6 = arith.constant 0 : index
    %c0_7 = arith.constant 0 : index
    %10 = vector.load %arg4[%c0_6, %c0_7] : memref<64x64xbf16, #tpu.memory_space<vmem>>, vector<64x64xbf16>
    %cst_8 = arith.constant dense<0.000000e+00> : vector<8x64xf32>
    %11 = tpu.matmul %9, %10, %cst_8 {dimension_numbers = #tpu.dot_dimension_numbers<[1], [0], [0], [1], [0, 0, 1, 1], [], []>} : vector<8x64xbf16>, vector<64x64xbf16>, vector<8x64xf32> -> vector<8x64xf32>
    %c0_9 = arith.constant 0 : index
    %c0_10 = arith.constant 0 : index
    %12 = vector.load %arg5[%c0_9, %c0_10] : memref<1x64xf32, #tpu.memory_space<vmem>>, vector<1x64xf32>
    %13 = vector.broadcast %12 : vector<1x64xf32> to vector<8x64xf32>
    %14 = arith.addf %11, %13 : vector<8x64xf32>
    %cst_11 = arith.constant 0.000000e+00 : f32
    %15 = vector.broadcast %cst_11 : f32 to vector<8x64xf32>
    %16 = arith.maximumf %14, %15 : vector<8x64xf32>
    %17 = arith.truncf %16 : vector<8x64xf32> to vector<8x64xbf16>
    %c0_12 = arith.constant 0 : index
    %c0_13 = arith.constant 0 : index
    %18 = vector.load %arg6[%c0_12, %c0_13] : memref<64x2xbf16, #tpu.memory_space<vmem>>, vector<64x2xbf16>
    %cst_14 = arith.constant dense<0.000000e+00> : vector<8x2xf32>
    %19 = tpu.matmul %17, %18, %cst_14 {dimension_numbers = #tpu.dot_dimension_numbers<[1], [0], [0], [1], [0, 0, 1, 1], [], []>} : vector<8x64xbf16>, vector<64x2xbf16>, vector<8x2xf32> -> vector<8x2xf32>
    %c0_15 = arith.constant 0 : index
    %c0_16 = arith.constant 0 : index
    %20 = vector.load %arg7[%c0_15, %c0_16] : memref<1x2xf32, #tpu.memory_space<vmem>>, vector<1x2xf32>
    %21 = vector.broadcast %20 : vector<1x2xf32> to vector<8x2xf32>
    %22 = arith.addf %19, %21 : vector<8x2xf32>
    %c0_17 = arith.constant 0 : index
    %c0_18 = arith.constant 0 : index
    %23 = vector.load %arg8[%c0_17, %c0_18] : memref<8x2xf32, #tpu.memory_space<vmem>>, vector<8x2xf32>
    tpu.vector_store %arg8[%c0_17, %c0_18], %22 {strides = array<i32>} : memref<8x2xf32, #tpu.memory_space<vmem>>, vector<8x2xf32>,
    return
  }
  func.func @transform_0(%arg0: i32) -> (i32, i32) {
    %c0_i32 = arith.constant 0 : i32
    %c0_i32_0 = arith.constant 0 : i32
    return %arg0, %c0_i32 : i32, i32
  }
  func.func @transform_1(%arg0: i32) -> (i32, i32) {
    %c0_i32 = arith.constant 0 : i32
    %c0_i32_0 = arith.constant 0 : i32
    %c0_i32_1 = arith.constant 0 : i32
    return %c0_i32, %c0_i32_0 : i32, i32
  }
  func.func @transform_2(%arg0: i32) -> (i32, i32) {
    %c0_i32 = arith.constant 0 : i32
    %c0_i32_0 = arith.constant 0 : i32
    %c0_i32_1 = arith.constant 0 : i32
    return %c0_i32, %c0_i32_0 : i32, i32
  }
  func.func @transform_3(%arg0: i32) -> (i32, i32) {
    %c0_i32 = arith.constant 0 : i32
    %c0_i32_0 = arith.constant 0 : i32
    %c0_i32_1 = arith.constant 0 : i32
    return %c0_i32, %c0_i32_0 : i32, i32
  }
  func.func @transform_4(%arg0: i32) -> (i32, i32) {
    %c0_i32 = arith.constant 0 : i32
    %c0_i32_0 = arith.constant 0 : i32
    %c0_i32_1 = arith.constant 0 : i32
    return %c0_i32, %c0_i32_0 : i32, i32
  }
  func.func @transform_5(%arg0: i32) -> (i32, i32) {
    %c0_i32 = arith.constant 0 : i32
    %c0_i32_0 = arith.constant 0 : i32
    %c0_i32_1 = arith.constant 0 : i32
    return %c0_i32, %c0_i32_0 : i32, i32
  }
  func.func @transform_6(%arg0: i32) -> (i32, i32) {
    %c0_i32 = arith.constant 0 : i32
    %c0_i32_0 = arith.constant 0 : i32
    %c0_i32_1 = arith.constant 0 : i32
    return %c0_i32, %c0_i32_0 : i32, i32
  }
  func.func @transform_7(%arg0: i32) -> (i32, i32) {
    %c0_i32 = arith.constant 0 : i32
    %c0_i32_0 = arith.constant 0 : i32
    return %arg0, %c0_i32 : i32, i32
  }
}

</mosaic_0001>

<llo_original>
// kernel: tpu_custom_call.1
$region0: #{tpu_custom_call.1}
  #allocation0 [shape = 'u32[]', space=smem, size = 0x4, offset = 0x4, fixed_abs, tag = 'smem constant byte address 0x4 - core index']
  #allocation1 [shape = 'u32[72,128]{1,0:T(1,128)}', space=vmem, size = 0x9000, scoped, tag = 'internal scratch']
  %s0 = inlined_call_operand.hbm [shape: f32[16,32], index: 0, kind: input, shape index: {}]
  %s1 = inlined_call_operand.hbm [shape: bf16[32,64], index: 1, kind: input, shape index: {}]
  %s2 = inlined_call_operand.vmem [shape: f32[1,64], index: 2, kind: input, shape index: {}]
  %s3 = inlined_call_operand.vmem [shape: bf16[64,64], index: 3, kind: input, shape index: {}]
  %s4 = inlined_call_operand.vmem [shape: f32[1,64], index: 4, kind: input, shape index: {}]
  %s5 = inlined_call_operand.vmem [shape: bf16[64,2], index: 5, kind: input, shape index: {}]
  %s6 = inlined_call_operand.vmem [shape: f32[1,2], index: 6, kind: input, shape index: {}]
  %s7 = inlined_call_operand.vmem [shape: f32[16,2], index: 7, kind: output, shape index: {}]
  %s8 = sld [smem:[#allocation0]]
  $region69: #{tpu_custom_call.1} parent=0
    _
  %s10 = ssub.s32 1, %s8
  %s11 = scalar_select 0, %s10, %s8
  $region1: #{tpu_custom_call.1} parent=0
    #allocation2 [shape = 'u8[8192]{0}', space=vmem, size = 0x2000, scoped, tag = 'input window, operand 0']
    #allocation3 [shape = 's32[2]{0}', space=sflag, size = 0x8, scoped, tag = 'scoped memory for tpu_custom_call.1']
    #allocation4 [shape = 'u8[8192]{0}', space=vmem, size = 0x2000, scoped, tag = 'input window, operand 1, single buffered']
    #allocation5 [shape = 's32[1]{0}', space=sflag, size = 0x4, scoped, tag = 'scoped memory for tpu_custom_call.1']
    %12 = vsyncpa [#allocation3], 0
    %s13 = scalar_lea.sflag [#allocation3], 1
    %14 = vsyncpa %s13, 0
    %15 = vsyncpa [#allocation5], 0
    loop: start=0, step=1, limit=4
    $region2: #{tpu_custom_call.1} parent=1 // loop_pre_header
      _
    $region3: #{tpu_custom_call.1} parent=1 // loop_header
      %s17 = sphi 0, %s21
      %p18 = scmp.ge.s32.totalorder %s17, 4
      %s27 = sphi 0, %s29
      %s30 = sphi 0, %s27
      %s31 = sphi 0, %s30
      %s47 = sphi 0, %s31
      %s51 = sphi 0, %s51
      %s53 = sphi 0, %s51
      %s54 = sphi 0, %s53
      %s68 = sphi 0, %s54
      %s72 = sphi 0, %s72
      %s74 = sphi 0, %s72
      %s75 = sphi 0, %s74
      %s89 = sphi 0, %s75
      %s93 = sphi 0, %s93
      %s95 = sphi 0, %s93
      %s96 = sphi 0, %s95
      %s110 = sphi 0, %s96
      %s114 = sphi 0, %s114
      %s116 = sphi 0, %s114
      %s117 = sphi 0, %s116
      %s131 = sphi 0, %s117
      %s135 = sphi 0, %s135
      %s137 = sphi 0, %s135
      %s138 = sphi 0, %s137
      %s152 = sphi 0, %s138
      %s156 = sphi 0, %s156
      %s158 = sphi 0, %s156
      %s159 = sphi 0, %s158
      %s173 = sphi 0, %s159
      %s179 = sphi 0, %s181
      %s182 = sphi 0, %s179
      %s183 = sphi 0, %s182
      %s199 = sphi 0, %s183
    $region4: #{tpu_custom_call.1} parent=1 // loop_header_branch
      %20 = sbr.rel (%p18) target = $region8
    $region5: #{tpu_custom_call.1} parent=1 // loop_body
      %s22 = ssub.s32 %s17, 1
      %s23 = ssub.s32 %s17, 2
      %s24 = sadd.s32 %s17, 1
      %s25 = ssub.s32 %s17, %s24
      %p26 = scmp.eq.s32.totalorder %s25, 0
      %s28 = sadd.s32 %s27, 1
      %s29 = scalar_select %p26, %s27, %s28
      %p32 = pneg %p26
      %p33 = scmp.eq.s32.totalorder %s17, 1
      %p34 = por %p32, %p33
      %p35 = scmp.ne.s32.totalorder %s27, %s30
      %p36 = scmp.eq.s32.totalorder %s17, 0
      %p37 = por %p35, %p36
      %p38 = scmp.ne.s32.totalorder %s27, %s30
      %p39 = scmp.eq.s32.totalorder %s22, 1
      %p40 = por %p38, %p39
      %p41 = scmp.ne.s32.totalorder %s30, %s31
      %p42 = scmp.eq.s32.totalorder %s22, 0
      %p43 = por %p41, %p42
      %p44 = scmp.ne.s32.totalorder %s30, %s31
      %p45 = scmp.eq.s32.totalorder %s23, 1
      %p46 = por %p44, %p45
      %p48 = scmp.ne.s32.totalorder %s31, %s47
      %p49 = scmp.eq.s32.totalorder %s23, 0
      %p50 = por %p48, %p49
      %s52 = sadd.s32 %s51, 1
      %p55 = scmp.eq.s32.totalorder %s17, 1
      %p56 = scmp.ne.s32.totalorder %s51, %s53
      %p57 = scmp.eq.s32.totalorder %s17, 0
      %p58 = por %p56, %p57
      %p59 = scmp.ne.s32.totalorder %s51, %s53
      %p60 = scmp.eq.s32.totalorder %s22, 1
      %p61 = por %p59, %p60
      %p62 = scmp.ne.s32.totalorder %s53, %s54
      %p63 = scmp.eq.s32.totalorder %s22, 0
      %p64 = por %p62, %p63
      %p65 = scmp.ne.s32.totalorder %s53, %s54
      %p66 = scmp.eq.s32.totalorder %s23, 1
      %p67 = por %p65, %p66
      %p69 = scmp.ne.s32.totalorder %s54, %s68
      %p70 = scmp.eq.s32.totalorder %s23, 0
      %p71 = por %p69, %p70
      %s73 = sadd.s32 %s72, 1
      %p76 = scmp.eq.s32.totalorder %s17, 1
      %p77 = scmp.ne.s32.totalorder %s72, %s74
      %p78 = scmp.eq.s32.totalorder %s17, 0
      %p79 = por %p77, %p78
      %p80 = scmp.ne.s32.totalorder %s72, %s74
      %p81 = scmp.eq.s32.totalorder %s22, 1
      %p82 = por %p80, %p81
      %p83 = scmp.ne.s32.totalorder %s74, %s75
      %p84 = scmp.eq.s32.totalorder %s22, 0
      %p85 = por %p83, %p84
      %p86 = scmp.ne.s32.totalorder %s74, %s75
      %p87 = scmp.eq.s32.totalorder %s23, 1
      %p88 = por %p86, %p87
      %p90 = scmp.ne.s32.totalorder %s75, %s89
      %p91 = scmp.eq.s32.totalorder %s23, 0
      %p92 = por %p90, %p91
      %s94 = sadd.s32 %s93, 1
      %p97 = scmp.eq.s32.totalorder %s17, 1
      %p98 = scmp.ne.s32.totalorder %s93, %s95
      %p99 = scmp.eq.s32.totalorder %s17, 0
      %p100 = por %p98, %p99
      %p101 = scmp.ne.s32.totalorder %s93, %s95
      %p102 = scmp.eq.s32.totalorder %s22, 1
      %p103 = por %p101, %p102
      %p104 = scmp.ne.s32.totalorder %s95, %s96
      %p105 = scmp.eq.s32.totalorder %s22, 0
      %p106 = por %p104, %p105
      %p107 = scmp.ne.s32.totalorder %s95, %s96
      %p108 = scmp.eq.s32.totalorder %s23, 1
      %p109 = por %p107, %p108
      %p111 = scmp.ne.s32.totalorder %s96, %s110
      %p112 = scmp.eq.s32.totalorder %s23, 0
      %p113 = por %p111, %p112
      %s115 = sadd.s32 %s114, 1
      %p118 = scmp.eq.s32.totalorder %s17, 1
      %p119 = scmp.ne.s32.totalorder %s114, %s116
      %p120 = scmp.eq.s32.totalorder %s17, 0
      %p121 = por %p119, %p120
      %p122 = scmp.ne.s32.totalorder %s114, %s116
      %p123 = scmp.eq.s32.totalorder %s22, 1
      %p124 = por %p122, %p123
      %p125 = scmp.ne.s32.totalorder %s116, %s117
      %p126 = scmp.eq.s32.totalorder %s22, 0
      %p127 = por %p125, %p126
      %p128 = scmp.ne.s32.totalorder %s116, %s117
      %p129 = scmp.eq.s32.totalorder %s23, 1
      %p130 = por %p128, %p129
      %p132 = scmp.ne.s32.totalorder %s117, %s131
      %p133 = scmp.eq.s32.totalorder %s23, 0
      %p134 = por %p132, %p133
      %s136 = sadd.s32 %s135, 1
      %p139 = scmp.eq.s32.totalorder %s17, 1
      %p140 = scmp.ne.s32.totalorder %s135, %s137
      %p141 = scmp.eq.s32.totalorder %s17, 0
      %p142 = por %p140, %p141
      %p143 = scmp.ne.s32.totalorder %s135, %s137
      %p144 = scmp.eq.s32.totalorder %s22, 1
      %p145 = por %p143, %p144
      %p146 = scmp.ne.s32.totalorder %s137, %s138
      %p147 = scmp.eq.s32.totalorder %s22, 0
      %p148 = por %p146, %p147
      %p149 = scmp.ne.s32.totalorder %s137, %s138
      %p150 = scmp.eq.s32.totalorder %s23, 1
      %p151 = por %p149, %p150
      %p153 = scmp.ne.s32.totalorder %s138, %s152
      %p154 = scmp.eq.s32.totalorder %s23, 0
      %p155 = por %p153, %p154
      %s157 = sadd.s32 %s156, 1
      %p160 = scmp.eq.s32.totalorder %s17, 1
      %p161 = scmp.ne.s32.totalorder %s156, %s158
      %p162 = scmp.eq.s32.totalorder %s17, 0
      %p163 = por %p161, %p162
      %p164 = scmp.ne.s32.totalorder %s156, %s158
      %p165 = scmp.eq.s32.totalorder %s22, 1
      %p166 = por %p164, %p165
      %p167 = scmp.ne.s32.totalorder %s158, %s159
      %p168 = scmp.eq.s32.totalorder %s22, 0
      %p169 = por %p167, %p168
      %p170 = scmp.ne.s32.totalorder %s158, %s159
      %p171 = scmp.eq.s32.totalorder %s23, 1
      %p172 = por %p170, %p171
      %p174 = scmp.ne.s32.totalorder %s159, %s173
      %p175 = scmp.eq.s32.totalorder %s23, 0
      %p176 = por %p174, %p175
      %s177 = ssub.s32 %s17, %s24
      %p178 = scmp.eq.s32.totalorder %s177, 0
      %s180 = sadd.s32 %s179, 1
      %s181 = scalar_select %p178, %s179, %s180
      %p184 = pneg %p178
      %p185 = scmp.eq.s32.totalorder %s17, 1
      %p186 = por %p184, %p185
      %p187 = scmp.ne.s32.totalorder %s179, %s182
      %p188 = scmp.eq.s32.totalorder %s17, 0
      %p189 = por %p187, %p188
      %p190 = scmp.ne.s32.totalorder %s179, %s182
      %p191 = scmp.eq.s32.totalorder %s22, 1
      %p192 = por %p190, %p191
      %p193 = scmp.ne.s32.totalorder %s182, %s183
      %p194 = scmp.eq.s32.totalorder %s22, 0
      %p195 = por %p193, %p194
      %p196 = scmp.ne.s32.totalorder %s182, %s183
      %p197 = scmp.eq.s32.totalorder %s23, 1
      %p198 = por %p196, %p197
      %p200 = scmp.ne.s32.totalorder %s183, %s199
      %p201 = scmp.eq.s32.totalorder %s23, 0
      %p202 = por %p200, %p201
      %p203 = scmp.le.s32.totalorder 1, %s17
      %p204 = scmp.lt.s32.totalorder %s17, 3
      %p205 = pnand %p203, %p204
      %p206 = pneg %p205
      // Predicated region
      $region9: #{tpu_custom_call.1} parent=5 // pred_check
        _
      $region10: #{tpu_custom_call.1} parent=5 // pred_check_branch
        %208 = sbr.rel (%p205) target = $region12
      $region11: #{tpu_custom_call.1} parent=5 // pred_region
        %s209 = ssub.s32 %s17, 1
        // Predicated region
        $region13: #{tpu_custom_call.1} parent=11 // pred_check
          %p210 = pneg %p64
        $region14: #{tpu_custom_call.1} parent=11 // pred_check_branch
          %212 = sbr.rel (%p210) target = $region16
        $region15: #{tpu_custom_call.1} parent=11 // pred_region
          %214 = vsyncadd [#allocation5], 0
          %s215 = sshll.u32 %s1, 4
          %s216 = int_to_ptr.hbm [resolvable:$true] %s215
          %s217 = sshll.u32 [#allocation4], 4
          %s218 = int_to_ptr.vmem [resolvable:$true] %s217
          %223 = dma.hbm_to_vmem [thread:$0]  %s216, 256, %s218, [#allocation5], 64, 64, 4
        $region16: #{tpu_custom_call.1} parent=11 // pred_fallthru
          _
        // Predicated region
        $region17: #{tpu_custom_call.1} parent=11 // pred_check
          %p224 = pneg %p85
        $region18: #{tpu_custom_call.1} parent=11 // pred_check_branch
          %226 = sbr.rel (%p224) target = $region20
        $region19: #{tpu_custom_call.1} parent=11 // pred_region
          _
        $region20: #{tpu_custom_call.1} parent=11 // pred_fallthru
          _
        // Predicated region
        $region21: #{tpu_custom_call.1} parent=11 // pred_check
          %p227 = pneg %p106
        $region22: #{tpu_custom_call.1} parent=11 // pred_check_branch
          %229 = sbr.rel (%p227) target = $region24
        $region23: #{tpu_custom_call.1} parent=11 // pred_region
          _
        $region24: #{tpu_custom_call.1} parent=11 // pred_fallthru
          _
        // Predicated region
        $region25: #{tpu_custom_call.1} parent=11 // pred_check
          %p230 = pneg %p127
        $region26: #{tpu_custom_call.1} parent=11 // pred_check_branch
          %232 = sbr.rel (%p230) target = $region28
        $region27: #{tpu_custom_call.1} parent=11 // pred_region
          _
        $region28: #{tpu_custom_call.1} parent=11 // pred_fallthru
          _
        // Predicated region
        $region29: #{tpu_custom_call.1} parent=11 // pred_check
          %p233 = pneg %p148
        $region30: #{tpu_custom_call.1} parent=11 // pred_check_branch
          %235 = sbr.rel (%p233) target = $region32
        $region31: #{tpu_custom_call.1} parent=11 // pred_region
          _
        $region32: #{tpu_custom_call.1} parent=11 // pred_fallthru
          _
        // Predicated region
        $region33: #{tpu_custom_call.1} parent=11 // pred_check
          %p236 = pneg %p169
        $region34: #{tpu_custom_call.1} parent=11 // pred_check_branch
          %238 = sbr.rel (%p236) target = $region36
        $region35: #{tpu_custom_call.1} parent=11 // pred_region
          _
        $region36: #{tpu_custom_call.1} parent=11 // pred_fallthru
          _
      $region12: #{tpu_custom_call.1} parent=5 // pred_fallthru
        _
      %p239 = scmp.lt.s32.totalorder %s17, 2
      // Predicated region
      $region37: #{tpu_custom_call.1} parent=5 // pred_check
        %p240 = pneg %p239
      $region38: #{tpu_custom_call.1} parent=5 // pred_check_branch
        %242 = sbr.rel (%p240) target = $region40
      $region39: #{tpu_custom_call.1} parent=5 // pred_region
        // Predicated region
        $region41: #{tpu_custom_call.1} parent=39 // pred_check
          %p243 = pneg %p37
        $region42: #{tpu_custom_call.1} parent=39 // pred_check_branch
          %245 = sbr.rel (%p243) target = $region44
        $region43: #{tpu_custom_call.1} parent=39 // pred_region
          %s246 = sand.u32 %s27, 1
          %s247 = scalar_lea.sflag [#allocation3], %s246
          %s248 = sand.u32 %s27, 1
          %s249 = smul.addr %s248, 8
          %s250 = scalar_lea.vmem [#allocation2], %s249
          %252 = vsyncadd %s247, 0
          %s253 = smul.addr %s17, 8
          %s254 = scalar_lea.hbm %s0, %s253
          %s256 = sshll.u32 %s254, 4
          %s257 = int_to_ptr.hbm [resolvable:$true] %s256
          %s258 = sshll.u32 %s250, 4
          %s259 = int_to_ptr.vmem [resolvable:$true] %s258
          %261 = dma.hbm_to_vmem [thread:$0]  %s257, 128, %s259, %s247
        $region44: #{tpu_custom_call.1} parent=39 // pred_fallthru
          _
      $region40: #{tpu_custom_call.1} parent=5 // pred_fallthru
        _
      %p262 = scmp.le.s32.totalorder 1, %s17
      %p263 = scmp.lt.s32.totalorder %s17, 3
      %p264 = pnand %p262, %p263
      %p265 = pneg %p264
      // Predicated region
      $region45: #{tpu_custom_call.1} parent=5 // pred_check
        _
      $region46: #{tpu_custom_call.1} parent=5 // pred_check_branch
        %267 = sbr.rel (%p264) target = $region48
      $region47: #{tpu_custom_call.1} parent=5 // pred_region
        %s268 = ssub.s32 %s17, 1
        %s269 = sand.u32 %s30, 1
        %s270 = scalar_lea.sflag [#allocation3], %s269
        %s271 = sand.u32 %s30, 1
        %s272 = smul.addr %s271, 8
        %s273 = scalar_lea.vmem [#allocation2], %s272
        // Predicated region
        $region49: #{tpu_custom_call.1} parent=47 // pred_check
          %p274 = pneg %p43
        $region50: #{tpu_custom_call.1} parent=47 // pred_check_branch
          %276 = sbr.rel (%p274) target = $region52
        $region51: #{tpu_custom_call.1} parent=47 // pred_region
          %278 = dma.done %s270, 128
        $region52: #{tpu_custom_call.1} parent=47 // pred_fallthru
          _
        // Predicated region
        $region53: #{tpu_custom_call.1} parent=47 // pred_check
          %p279 = pneg %p64
        $region54: #{tpu_custom_call.1} parent=47 // pred_check_branch
          %281 = sbr.rel (%p279) target = $region56
        $region55: #{tpu_custom_call.1} parent=47 // pred_region
          %283 = dma.done [#allocation5], 256
        $region56: #{tpu_custom_call.1} parent=47 // pred_fallthru
          _
        %s284 = sand.u32 %s30, 1
        %s285 = scalar_lea.sflag [#allocation3], %s284
        %s286 = sand.u32 %s30, 1
        %s287 = smul.addr %s286, 8
        %s288 = scalar_lea.vmem [#allocation2], %s287
        %p289 = pneg %p43
        %p290 = pneg %p40
        %p291 = pneg %p64
        %p292 = pneg %p61
        %p293 = pneg %p85
        %p294 = pneg %p82
        %p295 = pneg %p106
        %p296 = pneg %p103
        %p297 = pneg %p127
        %p298 = pneg %p124
        %p299 = pneg %p148
        %p300 = pneg %p145
        %p301 = pneg %p169
        %p302 = pneg %p166
        %p303 = pneg %p195
        %p304 = pneg %p192
        %p305 = scmp.lt.s32.totalorder %s22, 1
        %s306 = scalar_select %p305, %s22, 1
        %s307 = smul.addr %s306, 8
        %s308 = scalar_lea.vmem %s7, %s307
        %p309 = scmp.lt.s32.totalorder %s22, 1
        %s310 = scalar_select %p309, %s22, 1
        %s311 = smul.addr %s310, 8
        %s312 = scalar_lea.vmem %s7, %s311
        %v314 = vld [vmem:[%s273] sm:$0xff]
        %v315 = vpack.c.bf16 %v314, %v314
        %v316 = vld [vmem:[#allocation4] sm:$0xf]
        %v317 = vld [vmem:[#allocation4 + $0x4] sm:$0xf]
        %v318 = vld [vmem:[#allocation4 + $0x8] sm:$0xf]
        %v319 = vld [vmem:[#allocation4 + $0xc] sm:$0xf]
        %v320 = vld [vmem:[%s2] sm:$0x1]
        %v322 = vperm.slane %v320, 0
        %v328 = vunpack.c.l.b16 %v316
        %v329 = vunpack.c.l.b16 %v317
        %v330 = vunpack.c.l.b16 %v318
        %v331 = vunpack.c.l.b16 %v319
        %v332 = vpack.c.b16 %v329, %v328
        %v333 = vpack.c.b16 %v331, %v330
        %vm336 = vcmask 261120
        %v338 = vsel %vm336, %v315, 0
        %340 = vmatpush.bf16.msra.mxu0 0
        %341 = vmatpush.bf16.msra.mxu0 0
        %342 = vmatpush.bf16.msra.mxu0 0
        %343 = vmatpush.bf16.msra.mxu0 0
        %344 = vmatpush.bf16.msra.mxu0 0
        %345 = vmatpush.bf16.msra.mxu0 0
        %346 = vmatpush.bf16.msra.mxu0 %v333
        %347 = vmatpush.bf16.msra.mxu0 %v332
        %348 = vmatmul.bf16.gmra.mxu0 %v338
        %v349 = vpop.f32.mrf.mxu0
        %v350 = vadd.f32 %v322, %v349
        %v351 = vpop.f32.mrf.mxu0
        %352 = vdwg.mxu0
        %v353 = vmax.f32 %v350, 0.0
        %v354 = vpack.c.bf16 %v353, %v353
        %v355 = vld [vmem:[%s3] sm:$0xf]
        %v356 = vld [vmem:[%s3 + $0x4] sm:$0xf]
        %v357 = vld [vmem:[%s3 + $0x8] sm:$0xf]
        %v358 = vld [vmem:[%s3 + $0xc] sm:$0xf]
        %v359 = vld [vmem:[%s3 + $0x10] sm:$0xf]
        %v360 = vld [vmem:[%s3 + $0x14] sm:$0xf]
        %v361 = vld [vmem:[%s3 + $0x18] sm:$0xf]
        %v362 = vld [vmem:[%s3 + $0x1c] sm:$0xf]
        %v363 = vld [vmem:[%s4] sm:$0x1]
        %v365 = vperm.slane %v363, 0
        %v375 = vunpack.c.l.b16 %v355
        %v376 = vunpack.c.l.b16 %v356
        %v377 = vunpack.c.l.b16 %v357
        %v378 = vunpack.c.l.b16 %v358
        %v379 = vunpack.c.l.b16 %v359
        %v380 = vunpack.c.l.b16 %v360
        %v381 = vunpack.c.l.b16 %v361
        %v382 = vunpack.c.l.b16 %v362
        %v383 = vpack.c.b16 %v376, %v375
        %v384 = vpack.c.b16 %v378, %v377
        %v385 = vpack.c.b16 %v380, %v379
        %v386 = vpack.c.b16 %v382, %v381
        %vm391 = vcmask 523264
        %v393 = vsel %vm391, %v354, 0
        %395 = vmatpush.bf16.msra.mxu0 0
        %396 = vmatpush.bf16.msra.mxu0 0
        %397 = vmatpush.bf16.msra.mxu0 0
        %398 = vmatpush.bf16.msra.mxu0 0
        %399 = vmatpush.bf16.msra.mxu0 %v386
        %400 = vmatpush.bf16.msra.mxu0 %v385
        %401 = vmatpush.bf16.msra.mxu0 %v384
        %402 = vmatpush.bf16.msra.mxu0 %v383
        %403 = vmatmul.bf16.gmra.mxu0 %v393
        %v404 = vpop.f32.mrf.mxu0
        %v405 = vadd.f32 %v365, %v404
        %v406 = vpop.f32.mrf.mxu0
        %407 = vdwg.mxu0
        %v408 = vmax.f32 %v405, 0.0
        %v409 = vpack.c.bf16 %v408, %v408
        %v410 = vld [vmem:[%s5] sm:$0xf]
        %v411 = vld [vmem:[%s5 + $0x4] sm:$0xf]
        %v412 = vld [vmem:[%s5 + $0x8] sm:$0xf]
        %v413 = vld [vmem:[%s5 + $0xc] sm:$0xf]
        %v414 = vld [vmem:[%s5 + $0x10] sm:$0xf]
        %v415 = vld [vmem:[%s5 + $0x14] sm:$0xf]
        %v416 = vld [vmem:[%s5 + $0x18] sm:$0xf]
        %v417 = vld [vmem:[%s5 + $0x1c] sm:$0xf]
        %v418 = vld [vmem:[%s6] sm:$0x1]
        %v420 = vperm.slane %v418, 0
        %v430 = vunpack.c.l.b16 %v410
        %v431 = vunpack.c.l.b16 %v411
        %v432 = vunpack.c.l.b16 %v412
        %v433 = vunpack.c.l.b16 %v413
        %v434 = vunpack.c.l.b16 %v414
        %v435 = vunpack.c.l.b16 %v415
        %v436 = vunpack.c.l.b16 %v416
        %v437 = vunpack.c.l.b16 %v417
        %v438 = vpack.c.b16 %v431, %v430
        %v439 = vpack.c.b16 %v433, %v432
        %v440 = vpack.c.b16 %v435, %v434
        %v441 = vpack.c.b16 %v437, %v436
        %v447 = vsel %vm391, %v409, 0
        %449 = vmatpush.bf16.msra.mxu0 0
        %450 = vmatpush.bf16.msra.mxu0 0
        %451 = vmatpush.bf16.msra.mxu0 0
        %452 = vmatpush.bf16.msra.mxu0 0
        %453 = vmatpush.bf16.msra.mxu0 %v441
        %454 = vmatpush.bf16.msra.mxu0 %v440
        %455 = vmatpush.bf16.msra.mxu0 %v439
        %456 = vmatpush.bf16.msra.mxu0 %v438
        %457 = vmatmul.bf16.gmra.mxu0 %v447
        %v458 = vpop.f32.mrf.mxu0
        %v459 = vadd.f32 %v420, %v458
        %v460 = vpop.f32.mrf.mxu0
        %461 = vdwg.mxu0
        %vm462 = vcmask 15360
        %463 = vst.msk [vmem:[%s312] sm:$0xff] %vm462, %v459
        %p464 = scmp.lt.s32.totalorder %s22, 1
        %s465 = scalar_select %p464, %s22, 1
        %s466 = smul.addr %s465, 8
        %s467 = scalar_lea.vmem %s7, %s466
        // Predicated region
        $region57: #{tpu_custom_call.1} parent=47 // pred_check
          %p468 = pneg %p192
        $region58: #{tpu_custom_call.1} parent=47 // pred_check_branch
          %470 = sbr.rel (%p468) target = $region60
        $region59: #{tpu_custom_call.1} parent=47 // pred_region
          _
        $region60: #{tpu_custom_call.1} parent=47 // pred_fallthru
          _
      $region48: #{tpu_custom_call.1} parent=5 // pred_fallthru
        _
      %p471 = scmp.le.s32.totalorder 2, %s17
      // Predicated region
      $region61: #{tpu_custom_call.1} parent=5 // pred_check
        %p472 = pneg %p471
      $region62: #{tpu_custom_call.1} parent=5 // pred_check_branch
        %474 = sbr.rel (%p472) target = $region64
      $region63: #{tpu_custom_call.1} parent=5 // pred_region
        %s475 = ssub.s32 %s17, 2
        // Predicated region
        $region65: #{tpu_custom_call.1} parent=63 // pred_check
          %p476 = pneg %p198
        $region66: #{tpu_custom_call.1} parent=63 // pred_check_branch
          %478 = sbr.rel (%p476) target = $region68
        $region67: #{tpu_custom_call.1} parent=63 // pred_region
          %p479 = scmp.lt.s32.totalorder %s23, 1
          %s480 = scalar_select %p479, %s23, 1
          %s481 = smul.addr %s480, 8
          %s482 = scalar_lea.vmem %s7, %s481
        $region68: #{tpu_custom_call.1} parent=63 // pred_fallthru
          _
      $region64: #{tpu_custom_call.1} parent=5 // pred_fallthru
        _
    $region6: #{tpu_custom_call.1} parent=1 // loop_footer
      %s21 = sadd.s32 1, %s17
    $region7: #{tpu_custom_call.1} parent=1 // loop_footer_branch
      %16 = sbr.rel target = $region3
    $region8: #{tpu_custom_call.1} parent=1 // loop_exit
      _
    %483 = vsyncpa [#allocation3], 1
    %s484 = scalar_lea.sflag [#allocation3], 1
    %485 = vsyncpa %s484, 1
    %486 = vsyncpa [#allocation5], 1

</llo_original>
